<compile_context>
chip_gen: v6e
topology: v6e:2x2x1
jax: 0.10.0
libtpu: 0.0.40
codegen_flags: <defaults>
</compile_context>

<pallas_src>
import jax
import jax.numpy as jnp
from jax.experimental import pallas as pl
from jax.experimental.pallas import tpu as pltpu


def _round_up(x: int, m: int) -> int:
    return ((x + m - 1) // m) * m


def _tpu_params():
    """Best-effort (num_tensorcores, vmem_capacity_bytes) with safe fallbacks."""
    num_cores = 1
    vmem_cap = 64 << 20  # conservative: every supported generation has >= 64 MiB / TC
    try:
        info = pltpu.get_tpu_info()
        vmem_cap = int(getattr(info, "vmem_capacity_bytes", vmem_cap))
        for attr in ("num_cores", "num_tensorcores", "tensorcores_per_chip", "core_count"):
            v = getattr(info, attr, None)
            if v:
                num_cores = int(v)
                break
    except Exception:
        pass
    return min(2, max(1, num_cores)), max(32 << 20, int(vmem_cap))


def _nll_loss_kernel(pred_ref, tgt_ref, out_ref):
    # pred_ref: (TILE, C) block, input dtype (cast to f32 in-kernel)
    # tgt_ref:  (TILE, 1) int32 block (padded / invalid rows hold sentinel == C)
    # out_ref:  (1, 128) f32 block — per-core partial sum, resident across the
    #           row-tile axis (acts as the accumulator; no scratch needed).
    t = pl.program_id(1)

    @pl.when(t == 0)
    def _init():
        out_ref[...] = jnp.zeros_like(out_ref)

    pred = pred_ref[...].astype(jnp.float32)            # (TILE, C)
    tgt = tgt_ref[...]                                  # (TILE, 1) int32
    rows, c = pred.shape

    # Gather pred[n, target[n]] via a lane-iota compare + select. Sentinel
    # targets (== C) never match, and jnp.where is a select, so garbage/NaN
    # pred rows in the ragged edge block contribute exactly 0.
    class_ids = jax.lax.broadcasted_iota(jnp.int32, (rows, c), dimension=1)
    selected = jnp.where(class_ids == tgt, pred, 0.0)   # (TILE, C), no one-hot temp
    out_ref[...] += jnp.sum(selected, keepdims=True)    # (1,1) broadcast over lanes


def nll_loss(pred: jax.Array, target: jax.Array) -> jax.Array:
    """pred: (N, C) log-probs (f32 or bf16); target: (N,) int labels. Scalar f32 mean NLL."""
    n, c = pred.shape
    itemsize = pred.dtype.itemsize
    num_cores, vmem_cap = _tpu_params()

    # --- tile sizing: DMA budget + VMEM budget + dtype sublane packing ---
    sublane = max(8, 32 // itemsize)          # 8 for f32, 16 for bf16, 32 for int8/fp8
    c_pad = _round_up(c, 128)                 # lane-padded class dim (VMEM/HBM tiling)

    dma_budget = 4 << 20                      # ~4 MiB of pred per grid step
    tile_dma = dma_budget // (c_pad * itemsize)

    # VMEM per row: double-buffered pred block + double-buffered lane-padded
    # (tile,1) int32 target block + in-kernel f32 temporaries (cast + select).
    per_row_vmem = 2 * c_pad * itemsize + 2 * 128 * 4 + 3 * c_pad * 4
    vmem_budget = min(vmem_cap // 2, 48 << 20)
    tile_vmem = vmem_budget // per_row_vmem

    tile_rows = _round_up(pl.cdiv(n, num_cores), sublane)  # no bigger than needed
    tile = min(tile_dma, tile_vmem, tile_rows)
    tile = max(sublane, (tile // sublane) * sublane)

    total_tiles = pl.cdiv(n, tile)
    num_cores = min(num_cores, total_tiles)
    tiles_per_core = pl.cdiv(total_tiles, num_cores)
    padded_n = num_cores * tiles_per_core * tile

    # Pad only the (tiny) target; sentinel class == C marks padded rows.
    target2d = target.astype(jnp.int32).reshape(n, 1)
    if padded_n != n:
        target2d = jnp.pad(target2d, ((0, padded_n - n), (0, 0)), constant_values=c)

    # pred streams unpadded. Clamp its block index so any excess grid tiles
    # (when num_cores*tiles_per_core > total_tiles) re-read the last valid
    # block; their targets are all sentinel, so they contribute 0.
    last_block = total_tiles - 1

    def pred_map(cc, t):
        return (jnp.minimum(cc * tiles_per_core + t, last_block), 0)

    def tgt_map(cc, t):
        return (cc * tiles_per_core + t, 0)

    footprint = tile * per_row_vmem + 4 * 128 * 4
    vmem_limit = int(min(56 << 20, max(32 << 20, footprint + (4 << 20))))

    partials = pl.pallas_call(
        _nll_loss_kernel,
        out_shape=jax.ShapeDtypeStruct((1, num_cores * 128), jnp.float32),
        grid_spec=pltpu.PrefetchScalarGridSpec(
            num_scalar_prefetch=0,
            grid=(num_cores, tiles_per_core),   # (core, row-tile)
            in_specs=[
                pl.BlockSpec((tile, c), pred_map),
                pl.BlockSpec((tile, 1), tgt_map),
            ],
            # Lane-dense (1,128) resident output block per core = accumulator.
            out_specs=pl.BlockSpec((1, 128), lambda cc, t: (0, cc)),
        ),
        compiler_params=pltpu.CompilerParams(
            dimension_semantics=("parallel", "arbitrary"),
            vmem_limit_bytes=vmem_limit,
        ),
    )(pred, target2d)

    # Combine per-core partials (every lane holds the full partial; take lane 0),
    # then apply the precomputed -1/N (true N, not padded).
    per_core = partials.reshape(num_cores, 128)[:, 0]
    return jnp.sum(per_core) * jnp.float32(-1.0 / n)


if __name__ == "__main__":
    # Small shapes consistent with the part-seg use: pred = (B*Npts, num_parts)
    # log-probabilities (output of log_softmax), target = (B*Npts,) labels.
    B, NPTS, NUM_PARTS = 2, 128, 50
    N = B * NPTS

    key = jax.random.PRNGKey(0)
    k1, k2 = jax.random.split(key)
    logits = jax.random.normal(k1, (N, NUM_PARTS), dtype=jnp.float32)
    pred = jax.nn.log_softmax(logits, axis=-1)           # log-probs, like the model output
    target = jax.random.randint(k2, (N,), 0, NUM_PARTS, dtype=jnp.int32)

    loss = nll_loss(pred, target)
    loss = jax.block_until_ready(loss)

    # Lightweight correctness check against a pure-JAX reference.
    ref = -jnp.mean(pred[jnp.arange(N), target])
    assert jnp.allclose(loss, ref, atol=1e-5, rtol=1e-5), (loss, ref)

    print("KERNEL_OK")
</pallas_src>

<mosaic_0001>
module attributes {stable_mosaic.version = 11 : i64} {
  func.func @_nll_loss_kernel(%arg0: i32, %arg1: i32, %arg2: memref<256x50xf32, #tpu.memory_space<vmem>>, %arg3: memref<256x1xi32, #tpu.memory_space<vmem>>, %arg4: memref<1x128xf32, #tpu.memory_space<vmem>>) attributes {dimension_semantics = [#tpu.dimension_semantics<parallel>, #tpu.dimension_semantics<arbitrary>], iteration_bounds = array<i64: 1, 1>, scalar_prefetch = 0 : i64, scratch_operands = 0 : i64, tpu.core_type = #tpu.core_type<tc>, window_params = [{transform_indices = @transform_0, window_bounds = array<i64: 256, 50>}, {transform_indices = @transform_1, window_bounds = array<i64: 256, 1>}, {transform_indices = @transform_2, window_bounds = array<i64: 1, 128>}]} {
    %c0_i32 = arith.constant 0 : i32
    %0 = arith.cmpi eq, %arg1, %c0_i32 : i32
    %1 = arith.extui %0 : i1 to i32
    %c0_i32_0 = arith.constant 0 : i32
    %2 = arith.cmpi ne, %1, %c0_i32_0 : i32
    scf.if %2 {
      %cst_9 = arith.constant 0.000000e+00 : f32
      %19 = vector.broadcast %cst_9 : f32 to vector<1x128xf32>
      %c0_10 = arith.constant 0 : index
      %c0_11 = arith.constant 0 : index
      %20 = vector.load %arg4[%c0_10, %c0_11] : memref<1x128xf32, #tpu.memory_space<vmem>>, vector<1x128xf32>
      tpu.vector_store %arg4[%c0_10, %c0_11], %19 {strides = array<i32>} : memref<1x128xf32, #tpu.memory_space<vmem>>, vector<1x128xf32>,
    } else {
    }
    %c0 = arith.constant 0 : index
    %c0_1 = arith.constant 0 : index
    %3 = vector.load %arg2[%c0, %c0_1] : memref<256x50xf32, #tpu.memory_space<vmem>>, vector<256x50xf32>
    %c0_2 = arith.constant 0 : index
    %c0_3 = arith.constant 0 : index
    %4 = vector.load %arg3[%c0_2, %c0_3] : memref<256x1xi32, #tpu.memory_space<vmem>>, vector<256x1xi32>
    %5 = tpu.iota {dimensions = array<i32: 1>} : vector<256x50xi32>
    %6 = vector.broadcast %4 : vector<256x1xi32> to vector<256x50xi32>
    %7 = arith.cmpi eq, %5, %6 : vector<256x50xi32>
    %cst = arith.constant 0.000000e+00 : f32
    %8 = vector.broadcast %cst : f32 to vector<256x50xf32>
    %9 = arith.select %7, %3, %8 : vector<256x50xi1>, vector<256x50xf32>
    %c0_4 = arith.constant 0 : index
    %c0_5 = arith.constant 0 : index
    %10 = vector.load %arg4[%c0_4, %c0_5] : memref<1x128xf32, #tpu.memory_space<vmem>>, vector<1x128xf32>
    %11 = vector.shape_cast %9 : vector<256x50xf32> to vector<1x256x50xf32>
    %cst_6 = arith.constant dense<0.000000e+00> : vector<1xf32>
    %12 = vector.multi_reduction <add>, %11, %cst_6 [1, 2] : vector<1x256x50xf32> to vector<1xf32>
    %13 = vector.shape_cast %12 : vector<1xf32> to vector<1x1x1xf32>
    %14 = vector.extract %13[0, 0, 0] : f32 from vector<1x1x1xf32>
    %15 = vector.broadcast %14 : f32 to vector<1x1xf32>
    %16 = vector.broadcast %15 : vector<1x1xf32> to vector<1x128xf32>
    %17 = arith.addf %10, %16 : vector<1x128xf32>
    %c0_7 = arith.constant 0 : index
    %c0_8 = arith.constant 0 : index
    %18 = vector.load %arg4[%c0_7, %c0_8] : memref<1x128xf32, #tpu.memory_space<vmem>>, vector<1x128xf32>
    tpu.vector_store %arg4[%c0_7, %c0_8], %17 {strides = array<i32>} : memref<1x128xf32, #tpu.memory_space<vmem>>, vector<1x128xf32>,
    return
  }
  func.func @transform_0(%arg0: i32, %arg1: i32) -> (i32, i32) {
    %c1_i32 = arith.constant 1 : i32
    %0 = arith.muli %arg0, %c1_i32 : i32
    %1 = arith.addi %0, %arg1 : i32
    %c0_i32 = arith.constant 0 : i32
    %2 = arith.minsi %1, %c0_i32 : i32
    %c0_i32_0 = arith.constant 0 : i32
    %c0_i32_1 = arith.constant 0 : i32
    return %2, %c0_i32_0 : i32, i32
  }
  func.func @transform_1(%arg0: i32, %arg1: i32) -> (i32, i32) {
    %c1_i32 = arith.constant 1 : i32
    %0 = arith.muli %arg0, %c1_i32 : i32
    %1 = arith.addi %0, %arg1 : i32
    %c0_i32 = arith.constant 0 : i32
    %c0_i32_0 = arith.constant 0 : i32
    return %1, %c0_i32 : i32, i32
  }
  func.func @transform_2(%arg0: i32, %arg1: i32) -> (i32, i32) {
    %c0_i32 = arith.constant 0 : i32
    %c0_i32_0 = arith.constant 0 : i32
    return %c0_i32, %arg0 : i32, i32
  }
}

</mosaic_0001>

<llo_original>
// kernel: tpu_custom_call.1
$region0: #{tpu_custom_call.1}
  #allocation0 [shape = 'u32[]', space=smem, size = 0x4, offset = 0x4, fixed_abs, tag = 'smem constant byte address 0x4 - core index']
  #allocation1 [shape = 'u32[144,128]{1,0:T(1,128)}', space=vmem, size = 0x12000, scoped, tag = 'internal scratch']
  %s0 = inlined_call_operand.vmem [shape: f32[256,50], index: 0, kind: input, shape index: {}]
  %s1 = inlined_call_operand.vmem [shape: s32[256,1], index: 1, kind: input, shape index: {}]
  %s2 = inlined_call_operand.hbm [shape: f32[1,128], index: 2, kind: output, shape index: {}]
  %s3 = sld [smem:[#allocation0]]
  $region22: #{tpu_custom_call.1} parent=0
    _
  %s5 = ssub.s32 1, %s3
  %s6 = scalar_select 0, %s5, %s3
  $region1: #{tpu_custom_call.1} parent=0
    #allocation2 [shape = 'u8[512]{0}', space=vmem, size = 0x400, scoped, tag = 'output window, operand 0, single buffered']
    #allocation3 [shape = 's32[1]{0}', space=sflag, size = 0x4, scoped, tag = 'scoped memory for tpu_custom_call.1']
    %7 = vsyncpa [#allocation3], 0
    // Predicated region
    $region2: #{tpu_custom_call.1} parent=1 // pred_check
      _
    $region3: #{tpu_custom_call.1} parent=1 // pred_check_branch
      %9 = sbr.rel (0) target = $region5
    $region4: #{tpu_custom_call.1} parent=1 // pred_region
      %s10 = sadd.s32 0, 0
      %p11 = scmp.lt.s32.totalorder %s10, 0
      %s12 = scalar_select %p11, %s10, 0
      %s13 = smul.u32 32, %s12
      %p14 = scmp.lt.s32.totalorder %s13, 31
      %s15 = scalar_select %p14, %s13, 31
      %s16 = smul.addr %s15, 8
      %s17 = scalar_lea.vmem %s0, %s16
      %s18 = sadd.s32 0, 0
      %p19 = scmp.lt.s32.totalorder %s18, 0
      %s20 = scalar_select %p19, %s18, 0
      %s21 = smul.u32 32, %s20
    $region5: #{tpu_custom_call.1} parent=1 // pred_fallthru
      _
    // Predicated region
    $region6: #{tpu_custom_call.1} parent=1 // pred_check
      _
    $region7: #{tpu_custom_call.1} parent=1 // pred_check_branch
      %23 = sbr.rel (0) target = $region9
    $region8: #{tpu_custom_call.1} parent=1 // pred_region
      %s24 = sadd.s32 0, 0
      %s25 = smul.u32 32, %s24
      %p26 = scmp.lt.s32.totalorder %s25, 31
      %s27 = scalar_select %p26, %s25, 31
      %s28 = smul.addr %s27, 8
      %s29 = scalar_lea.vmem %s1, %s28
      %s30 = sadd.s32 0, 0
      %s31 = smul.u32 32, %s30
    $region9: #{tpu_custom_call.1} parent=1 // pred_fallthru
      _
    %s32 = sadd.s32 0, 0
    %p33 = scmp.lt.s32.totalorder %s32, 0
    %s34 = scalar_select %p33, %s32, 0
    %s35 = smul.u32 32, %s34
    %p36 = scmp.lt.s32.totalorder %s35, 31
    %s37 = scalar_select %p36, %s35, 31
    %s38 = smul.addr %s37, 8
    %s39 = scalar_lea.vmem %s0, %s38
    %s40 = sadd.s32 0, 0
    %s41 = smul.u32 32, %s40
    %p42 = scmp.lt.s32.totalorder %s41, 31
    %s43 = scalar_select %p42, %s41, 31
    %s44 = smul.addr %s43, 8
    %s45 = scalar_lea.vmem %s1, %s44
    %s46 = sadd.s32 0, 0
    %p47 = scmp.lt.s32.totalorder %s46, 0
    %s48 = scalar_select %p47, %s46, 0
    %s49 = smul.u32 32, %s48
    %p50 = scmp.lt.s32.totalorder %s49, 31
    %s51 = scalar_select %p50, %s49, 31
    %s52 = smul.addr %s51, 8
    %s53 = scalar_lea.vmem %s0, %s52
    %s54 = sadd.s32 0, 0
    %p55 = scmp.lt.s32.totalorder %s54, 0
    %s56 = scalar_select %p55, %s54, 0
    %s57 = smul.u32 32, %s56
    %s58 = sadd.s32 0, 0
    %s59 = smul.u32 32, %s58
    %p60 = scmp.lt.s32.totalorder %s59, 31
    %s61 = scalar_select %p60, %s59, 31
    %s62 = smul.addr %s61, 8
    %s63 = scalar_lea.vmem %s1, %s62
    %s64 = sadd.s32 0, 0
    %s65 = smul.u32 32, %s64
    %p66 = scmp.eq.s32.totalorder 0, 0
    // Predicated region
    $region10: #{tpu_custom_call.1} parent=1 // pred_check
      %p67 = pneg %p66
    $region11: #{tpu_custom_call.1} parent=1 // pred_check_branch
      %69 = sbr.rel (%p67) target = $region13
    $region12: #{tpu_custom_call.1} parent=1 // pred_region
      %70 = vst [vmem:[#allocation2] sm:$0x1] 0.0
    $region13: #{tpu_custom_call.1} parent=1 // pred_fallthru
      _
    %v71 = vld [vmem:[%s53] sm:$0xff]
    %v72 = vld [vmem:[%s53 + $0x8] sm:$0xff]
    %v73 = vld [vmem:[%s53 + $0x10] sm:$0xff]
    %v74 = vld [vmem:[%s53 + $0x18] sm:$0xff]
    %v75 = vld [vmem:[%s53 + $0x20] sm:$0xff]
    %v76 = vld [vmem:[%s53 + $0x28] sm:$0xff]
    %v77 = vld [vmem:[%s53 + $0x30] sm:$0xff]
    %v78 = vld [vmem:[%s53 + $0x38] sm:$0xff]
    %v79 = vld [vmem:[%s53 + $0x40] sm:$0xff]
    %v80 = vld [vmem:[%s53 + $0x48] sm:$0xff]
    %v81 = vld [vmem:[%s53 + $0x50] sm:$0xff]
    %v82 = vld [vmem:[%s53 + $0x58] sm:$0xff]
    %v83 = vld [vmem:[%s53 + $0x60] sm:$0xff]
    %v84 = vld [vmem:[%s53 + $0x68] sm:$0xff]
    %v85 = vld [vmem:[%s53 + $0x70] sm:$0xff]
    %v86 = vld [vmem:[%s53 + $0x78] sm:$0xff]
    %v87 = vld [vmem:[%s53 + $0x80] sm:$0xff]
    %v88 = vld [vmem:[%s53 + $0x88] sm:$0xff]
    %v89 = vld [vmem:[%s53 + $0x90] sm:$0xff]
    %v90 = vld [vmem:[%s53 + $0x98] sm:$0xff]
    %v91 = vld [vmem:[%s53 + $0xa0] sm:$0xff]
    %v92 = vld [vmem:[%s53 + $0xa8] sm:$0xff]
    %v93 = vld [vmem:[%s53 + $0xb0] sm:$0xff]
    %v94 = vld [vmem:[%s53 + $0xb8] sm:$0xff]
    %v95 = vld [vmem:[%s53 + $0xc0] sm:$0xff]
    %v96 = vld [vmem:[%s53 + $0xc8] sm:$0xff]
    %v97 = vld [vmem:[%s53 + $0xd0] sm:$0xff]
    %v98 = vld [vmem:[%s53 + $0xd8] sm:$0xff]
    %v99 = vld [vmem:[%s53 + $0xe0] sm:$0xff]
    %v100 = vld [vmem:[%s53 + $0xe8] sm:$0xff]
    %v101 = vld [vmem:[%s53 + $0xf0] sm:$0xff]
    %v102 = vld [vmem:[%s53 + $0xf8] sm:$0xff]
    %v103 = vld [vmem:[%s63] sm:$0xff]
    %v104 = vld [vmem:[%s63 + $0x8] sm:$0xff]
    %v105 = vld [vmem:[%s63 + $0x10] sm:$0xff]
    %v106 = vld [vmem:[%s63 + $0x18] sm:$0xff]
    %v107 = vld [vmem:[%s63 + $0x20] sm:$0xff]
    %v108 = vld [vmem:[%s63 + $0x28] sm:$0xff]
    %v109 = vld [vmem:[%s63 + $0x30] sm:$0xff]
    %v110 = vld [vmem:[%s63 + $0x38] sm:$0xff]
    %v111 = vld [vmem:[%s63 + $0x40] sm:$0xff]
    %v112 = vld [vmem:[%s63 + $0x48] sm:$0xff]
    %v113 = vld [vmem:[%s63 + $0x50] sm:$0xff]
    %v114 = vld [vmem:[%s63 + $0x58] sm:$0xff]
    %v115 = vld [vmem:[%s63 + $0x60] sm:$0xff]
    %v116 = vld [vmem:[%s63 + $0x68] sm:$0xff]
    %v117 = vld [vmem:[%s63 + $0x70] sm:$0xff]
    %v118 = vld [vmem:[%s63 + $0x78] sm:$0xff]
    %v119 = vld [vmem:[%s63 + $0x80] sm:$0xff]
    %v120 = vld [vmem:[%s63 + $0x88] sm:$0xff]
    %v121 = vld [vmem:[%s63 + $0x90] sm:$0xff]
    %v122 = vld [vmem:[%s63 + $0x98] sm:$0xff]
    %v123 = vld [vmem:[%s63 + $0xa0] sm:$0xff]
    %v124 = vld [vmem:[%s63 + $0xa8] sm:$0xff]
    %v125 = vld [vmem:[%s63 + $0xb0] sm:$0xff]
    %v126 = vld [vmem:[%s63 + $0xb8] sm:$0xff]
    %v127 = vld [vmem:[%s63 + $0xc0] sm:$0xff]
    %v128 = vld [vmem:[%s63 + $0xc8] sm:$0xff]
    %v129 = vld [vmem:[%s63 + $0xd0] sm:$0xff]
    %v130 = vld [vmem:[%s63 + $0xd8] sm:$0xff]
    %v131 = vld [vmem:[%s63 + $0xe0] sm:$0xff]
    %v132 = vld [vmem:[%s63 + $0xe8] sm:$0xff]
    %v133 = vld [vmem:[%s63 + $0xf0] sm:$0xff]
    %v134 = vld [vmem:[%s63 + $0xf8] sm:$0xff]
    %v135 = vlaneseq
    %v136 = vand.u32 %v135, 127
    %137 = vset.pattern.permute.xlu0 0
    %138 = vperm.xlu0 %137, %v103
    %v139 = vpop.permute.xlu0 %138
    %140 = vset.pattern.permute.xlu0 0
    %141 = vperm.xlu0 %140, %v104
    %v142 = vpop.permute.xlu0 %141
    %143 = vset.pattern.permute.xlu0 0
    %144 = vperm.xlu0 %143, %v105
    %v145 = vpop.permute.xlu0 %144
    %146 = vset.pattern.permute.xlu0 0
    %147 = vperm.xlu0 %146, %v106
    %v148 = vpop.permute.xlu0 %147
    %149 = vset.pattern.permute.xlu0 0
    %150 = vperm.xlu0 %149, %v107
    %v151 = vpop.permute.xlu0 %150
    %152 = vset.pattern.permute.xlu0 0
    %153 = vperm.xlu0 %152, %v108
    %v154 = vpop.permute.xlu0 %153
    %155 = vset.pattern.permute.xlu0 0
    %156 = vperm.xlu0 %155, %v109
    %v157 = vpop.permute.xlu0 %156
    %158 = vset.pattern.permute.xlu0 0
    %159 = vperm.xlu0 %158, %v110
    %v160 = vpop.permute.xlu0 %159
    %161 = vset.pattern.permute.xlu0 0
    %162 = vperm.xlu0 %161, %v111
    %v163 = vpop.permute.xlu0 %162
    %164 = vset.pattern.permute.xlu0 0
    %165 = vperm.xlu0 %164, %v112
    %v166 = vpop.permute.xlu0 %165
    %167 = vset.pattern.permute.xlu0 0
    %168 = vperm.xlu0 %167, %v113
    %v169 = vpop.permute.xlu0 %168
    %170 = vset.pattern.permute.xlu0 0
    %171 = vperm.xlu0 %170, %v114
    %v172 = vpop.permute.xlu0 %171
    %173 = vset.pattern.permute.xlu0 0
    %174 = vperm.xlu0 %173, %v115
    %v175 = vpop.permute.xlu0 %174
    %176 = vset.pattern.permute.xlu0 0
    %177 = vperm.xlu0 %176, %v116
    %v178 = vpop.permute.xlu0 %177
    %179 = vset.pattern.permute.xlu0 0
    %180 = vperm.xlu0 %179, %v117
    %v181 = vpop.permute.xlu0 %180
    %182 = vset.pattern.permute.xlu0 0
    %183 = vperm.xlu0 %182, %v118
    %v184 = vpop.permute.xlu0 %183
    %185 = vset.pattern.permute.xlu0 0
    %186 = vperm.xlu0 %185, %v119
    %v187 = vpop.permute.xlu0 %186
    %188 = vset.pattern.permute.xlu0 0
    %189 = vperm.xlu0 %188, %v120
    %v190 = vpop.permute.xlu0 %189
    %191 = vset.pattern.permute.xlu0 0
    %192 = vperm.xlu0 %191, %v121
    %v193 = vpop.permute.xlu0 %192
    %194 = vset.pattern.permute.xlu0 0
    %195 = vperm.xlu0 %194, %v122
    %v196 = vpop.permute.xlu0 %195
    %197 = vset.pattern.permute.xlu0 0
    %198 = vperm.xlu0 %197, %v123
    %v199 = vpop.permute.xlu0 %198
    %200 = vset.pattern.permute.xlu0 0
    %201 = vperm.xlu0 %200, %v124
    %v202 = vpop.permute.xlu0 %201
    %203 = vset.pattern.permute.xlu0 0
    %204 = vperm.xlu0 %203, %v125
    %v205 = vpop.permute.xlu0 %204
    %206 = vset.pattern.permute.xlu0 0
    %207 = vperm.xlu0 %206, %v126
    %v208 = vpop.permute.xlu0 %207
    %209 = vset.pattern.permute.xlu0 0
    %210 = vperm.xlu0 %209, %v127
    %v211 = vpop.permute.xlu0 %210
    %212 = vset.pattern.permute.xlu0 0
    %213 = vperm.xlu0 %212, %v128
    %v214 = vpop.permute.xlu0 %213
    %215 = vset.pattern.permute.xlu0 0
    %216 = vperm.xlu0 %215, %v129
    %v217 = vpop.permute.xlu0 %216
    %218 = vset.pattern.permute.xlu0 0
    %219 = vperm.xlu0 %218, %v130
    %v220 = vpop.permute.xlu0 %219
    %221 = vset.pattern.permute.xlu0 0
    %222 = vperm.xlu0 %221, %v131
    %v223 = vpop.permute.xlu0 %222
    %224 = vset.pattern.permute.xlu0 0
    %225 = vperm.xlu0 %224, %v132
    %v226 = vpop.permute.xlu0 %225
    %227 = vset.pattern.permute.xlu0 0
    %228 = vperm.xlu0 %227, %v133
    %v229 = vpop.permute.xlu0 %228
    %230 = vset.pattern.permute.xlu0 0
    %231 = vperm.xlu0 %230, %v134
    %v232 = vpop.permute.xlu0 %231
    %vm233 = vcmp.eq.s32.totalorder %v136, %v139
    %vm234 = vcmp.eq.s32.totalorder %v136, %v142
    %vm235 = vcmp.eq.s32.totalorder %v136, %v145
    %vm236 = vcmp.eq.s32.totalorder %v136, %v148
    %vm237 = vcmp.eq.s32.totalorder %v136, %v151
    %vm238 = vcmp.eq.s32.totalorder %v136, %v154
    %vm239 = vcmp.eq.s32.totalorder %v136, %v157
    %vm240 = vcmp.eq.s32.totalorder %v136, %v160
    %vm241 = vcmp.eq.s32.totalorder %v136, %v163
    %vm242 = vcmp.eq.s32.totalorder %v136, %v166
    %vm243 = vcmp.eq.s32.totalorder %v136, %v169
    %vm244 = vcmp.eq.s32.totalorder %v136, %v172
    %vm245 = vcmp.eq.s32.totalorder %v136, %v175
    %vm246 = vcmp.eq.s32.totalorder %v136, %v178
    %vm247 = vcmp.eq.s32.totalorder %v136, %v181
    %vm248 = vcmp.eq.s32.totalorder %v136, %v184
    %vm249 = vcmp.eq.s32.totalorder %v136, %v187
    %vm250 = vcmp.eq.s32.totalorder %v136, %v190
    %vm251 = vcmp.eq.s32.totalorder %v136, %v193
    %vm252 = vcmp.eq.s32.totalorder %v136, %v196
    %vm253 = vcmp.eq.s32.totalorder %v136, %v199
    %vm254 = vcmp.eq.s32.totalorder %v136, %v202
    %vm255 = vcmp.eq.s32.totalorder %v136, %v205
    %vm256 = vcmp.eq.s32.totalorder %v136, %v208
    %vm257 = vcmp.eq.s32.totalorder %v136, %v211
    %vm258 = vcmp.eq.s32.totalorder %v136, %v214
    %vm259 = vcmp.eq.s32.totalorder %v136, %v217
    %vm260 = vcmp.eq.s32.totalorder %v136, %v220
    %vm261 = vcmp.eq.s32.totalorder %v136, %v223
    %vm262 = vcmp.eq.s32.totalorder %v136, %v226
    %vm263 = vcmp.eq.s32.totalorder %v136, %v229
    %vm264 = vcmp.eq.s32.totalorder %v136, %v232
    %v265 = vsel %vm233, %v71, 0.0
    %v266 = vsel %vm234, %v72, 0.0
    %v267 = vsel %vm235, %v73, 0.0
    %v268 = vsel %vm236, %v74, 0.0
    %v269 = vsel %vm237, %v75, 0.0
    %v270 = vsel %vm238, %v76, 0.0
    %v271 = vsel %vm239, %v77, 0.0
    %v272 = vsel %vm240, %v78, 0.0
    %v273 = vsel %vm241, %v79, 0.0
    %v274 = vsel %vm242, %v80, 0.0
    %v275 = vsel %vm243, %v81, 0.0
    %v276 = vsel %vm244, %v82, 0.0
    %v277 = vsel %vm245, %v83, 0.0
    %v278 = vsel %vm246, %v84, 0.0
    %v279 = vsel %vm247, %v85, 0.0
    %v280 = vsel %vm248, %v86, 0.0
    %v281 = vsel %vm249, %v87, 0.0
    %v282 = vsel %vm250, %v88, 0.0
    %v283 = vsel %vm251, %v89, 0.0
    %v284 = vsel %vm252, %v90, 0.0
    %v285 = vsel %vm253, %v91, 0.0
    %v286 = vsel %vm254, %v92, 0.0
    %v287 = vsel %vm255, %v93, 0.0
    %v288 = vsel %vm256, %v94, 0.0
    %v289 = vsel %vm257, %v95, 0.0
    %v290 = vsel %vm258, %v96, 0.0
    %v291 = vsel %vm259, %v97, 0.0
    %v292 = vsel %vm260, %v98, 0.0
    %v293 = vsel %vm261, %v99, 0.0
    %v294 = vsel %vm262, %v100, 0.0
    %v295 = vsel %vm263, %v101, 0.0
    %v296 = vsel %vm264, %v102, 0.0
    %v297 = vld [vmem:[#allocation2] sm:$0x1]
    %vm298 = vcmask 408576
    %v299 = vsel %vm298, %v265, 0.0
    %v300 = vsel %vm298, %v266, 0.0
    %v301 = vadd.f32 %v299, %v300
    %v302 = vsel %vm298, %v267, 0.0
    %v303 = vadd.f32 %v301, %v302
    %v304 = vsel %vm298, %v268, 0.0
    %v305 = vadd.f32 %v303, %v304
    %v306 = vsel %vm298, %v269, 0.0
    %v307 = vadd.f32 %v305, %v306
    %v308 = vsel %vm298, %v270, 0.0
    %v309 = vadd.f32 %v307, %v308
    %v310 = vsel %vm298, %v271, 0.0
    %v311 = vadd.f32 %v309, %v310
    %v312 = vsel %vm298, %v272, 0.0
    %v313 = vadd.f32 %v311, %v312
    %v314 = vsel %vm298, %v273, 0.0
    %v315 = vadd.f32 %v313, %v314
    %v316 = vsel %vm298, %v274, 0.0
    %v317 = vadd.f32 %v315, %v316
    %v318 = vsel %vm298, %v275, 0.0
    %v319 = vadd.f32 %v317, %v318
    %v320 = vsel %vm298, %v276, 0.0
    %v321 = vadd.f32 %v319, %v320
    %v322 = vsel %vm298, %v277, 0.0
    %v323 = vadd.f32 %v321, %v322
    %v324 = vsel %vm298, %v278, 0.0
    %v325 = vadd.f32 %v323, %v324
    %v326 = vsel %vm298, %v279, 0.0
    %v327 = vadd.f32 %v325, %v326
    %v328 = vsel %vm298, %v280, 0.0
    %v329 = vadd.f32 %v327, %v328
    %v330 = vsel %vm298, %v281, 0.0
    %v331 = vadd.f32 %v329, %v330
    %v332 = vsel %vm298, %v282, 0.0
    %v333 = vadd.f32 %v331, %v332
    %v334 = vsel %vm298, %v283, 0.0
    %v335 = vadd.f32 %v333, %v334
    %v336 = vsel %vm298, %v284, 0.0
    %v337 = vadd.f32 %v335, %v336
    %v338 = vsel %vm298, %v285, 0.0
    %v339 = vadd.f32 %v337, %v338
    %v340 = vsel %vm298, %v286, 0.0
    %v341 = vadd.f32 %v339, %v340
    %v342 = vsel %vm298, %v287, 0.0
    %v343 = vadd.f32 %v341, %v342
    %v344 = vsel %vm298, %v288, 0.0
    %v345 = vadd.f32 %v343, %v344
    %v346 = vsel %vm298, %v289, 0.0
    %v347 = vadd.f32 %v345, %v346
    %v348 = vsel %vm298, %v290, 0.0
    %v349 = vadd.f32 %v347, %v348
    %v350 = vsel %vm298, %v291, 0.0
    %v351 = vadd.f32 %v349, %v350
    %v352 = vsel %vm298, %v292, 0.0
    %v353 = vadd.f32 %v351, %v352
    %v354 = vsel %vm298, %v293, 0.0
    %v355 = vadd.f32 %v353, %v354
    %v356 = vsel %vm298, %v294, 0.0
    %v357 = vadd.f32 %v355, %v356
    %v358 = vsel %vm298, %v295, 0.0
    %v359 = vadd.f32 %v357, %v358
    %v360 = vsel %vm298, %v296, 0.0
    %v361 = vadd.f32 %v359, %v360
    %362 = vadd.xlane.f32.xlu0 %v361
    %v363 = vpop.xlane.xlu0 %362
    %v364 = vrot.slane %v363, 4
    %v365 = vadd.f32 %v363, %v364
    %v366 = vrot.slane %v365, 2
    %v367 = vadd.f32 %v365, %v366
    %v368 = vrot.slane %v367, 1
    %v369 = vadd.f32 %v367, %v368
    %s370 = vtos %v369
    %v371 = vstv %s370
    %v372 = vadd.f32 %v297, %v371
    %373 = vst [vmem:[#allocation2] sm:$0x1] %v372
    // Predicated region
    $region14: #{tpu_custom_call.1} parent=1 // pred_check
      _
    $region15: #{tpu_custom_call.1} parent=1 // pred_check_branch
      %375 = sbr.rel (0) target = $region17
    $region16: #{tpu_custom_call.1} parent=1 // pred_region
      %s377 = ssub.s32 16, 16
      %378 = vsyncadd [#allocation3], %s377
      %s380 = sshll.u32 [#allocation2], 4
      %s381 = int_to_ptr.vmem [resolvable:$true] %s380
      %383 = dma.vmem_to_hbm [thread:$0]  %s381, 16, %s2, [#allocation3]
    $region17: #{tpu_custom_call.1} parent=1 // pred_fallthru
      _
    // Predicated region
    $region18: #{tpu_custom_call.1} parent=1 // pred_check
      _
    $region19: #{tpu_custom_call.1} parent=1 // pred_check_branch
      %385 = sbr.rel (0) target = $region21
    $region20: #{tpu_custom_call.1} parent=1 // pred_region
      %386 = dma.done [#allocation3], 16
    $region21: #{tpu_custom_call.1} parent=1 // pred_fallthru
      _
    %387 = vsyncpa [#allocation3], 1

</llo_original>
